<compile_context>
chip_gen: v5e
topology: v5e:2x2
jax: 0.10.0
libtpu: 0.0.40
codegen_flags: <defaults>
</compile_context>

<pallas_src>
from functools import partial

import jax
import jax.numpy as jnp
import numpy as np
from jax.experimental import pallas as pl
from jax.experimental.pallas import tpu as pltpu


def _gnn_kernel(h_ref, bias_ref, w_attn_ref, w_nh_ref, w_nm_ref, b_node_ref,
                out_ref):
    """Single-step kernel: all T slices processed as one block-diagonal problem.

    h_ref      : (T*N, H)    f32  node features, slice t occupies rows [t*N, (t+1)*N)
    bias_ref   : (T*N, T*N)  f32  additive mask: 0 on block-diagonal edges, -1e9 else
    w_attn_ref : (H, 2)      f32  fused [w_dst | w_src]
    w_nh_ref   : (H, H)      f32  node-model weight on h
    w_nm_ref   : (H, H)      f32  node-model weight on msg
    b_node_ref : (1, H)      f32
    out_ref    : (T*N, H)    f32
    """
    h_all = h_ref[...]                                   # (TN, H)
    bias = bias_ref[...]                                  # (TN, TN)
    w_attn = w_attn_ref[...]                               # (H, 2)
    w_nh = w_nh_ref[...]                                   # (H, H)
    w_nm = w_nm_ref[...]                                   # (H, H)
    b_node = b_node_ref[...]                               # (1, H)

    # --- fused attention projection: one matmul for dst+src scores ----------
    scores = jnp.dot(h_all, w_attn,
                     preferred_element_type=jnp.float32)   # (TN, 2)
    s_dst = scores[:, 0:1]                                  # (TN, 1)
    s_src = scores[:, 1:2]                                  # (TN, 1)

    # --- one block-diagonal masked softmax over all T slices ---------------
    e = s_dst + s_src.T + bias                              # (TN, TN)
    e_max = jnp.max(e, axis=-1, keepdims=True)
    p = jnp.exp(e - e_max)                                  # masked entries -> 0
    denom = jnp.sum(p, axis=-1, keepdims=True)
    alpha = p / denom                                       # exact divide (parity)

    # --- one aggregation matmul for all messages ----------------------------
    msg = jnp.dot(alpha, h_all,
                  preferred_element_type=jnp.float32)       # (TN, H)

    # --- node update: relu(h @ W_nh + msg @ W_nm + b) ------------------------
    upd = (jnp.dot(h_all, w_nh, preferred_element_type=jnp.float32)
           + jnp.dot(msg, w_nm, preferred_element_type=jnp.float32)
           + b_node)
    out_ref[...] = jnp.maximum(upd, 0.0)                    # (TN, H)


def gnn_block_forward(nf_nth, adj, params):
    """nf_nth: (N, T, H) float32, adj: (N, N) float32. Returns (N, T, H)."""
    N, T, H = nf_nth.shape
    TN = T * N
    w_src, w_dst, b_attn, w_nh, w_nm, b_node = params
    del b_attn  # a constant per-row logit shift cancels in the softmax

    # Fuse attention weights once, outside the kernel.
    w_attn = jnp.concatenate([w_dst, w_src], axis=1)        # (H, 2)

    # Wrapper-side layout plumbing (XLA handles these tiny transposes for free):
    #   (N, T, H) -> (T*N, H), slice t in rows [t*N, (t+1)*N)
    h_all = jnp.transpose(nf_nth, (1, 0, 2)).reshape(TN, H)

    # Block-diagonal additive attention bias: 0 where edge j -> i in slice t,
    # -1e9 everywhere else (including cross-slice positions).
    adj_mask = (adj > 0.0).astype(jnp.float32)               # (N, N)
    block_mask = jnp.kron(jnp.eye(T, dtype=jnp.float32), adj_mask)   # (TN, TN)
    bias = jnp.where(block_mask > 0.0, 0.0, -1e9).astype(jnp.float32)

    flops = (2 * TN * H * 2            # attention scores
             + 2 * TN * TN * H         # alpha @ h
             + 2 * 2 * TN * H * H)     # node update (two dots)
    cost = pl.CostEstimate(
        flops=flops,
        transcendentals=TN * TN,
        bytes_accessed=4 * (2 * TN * H + TN * TN + 2 * H + 2 * H * H + H))

    full = lambda i: (0, 0)

    out2 = pl.pallas_call(
        _gnn_kernel,
        out_shape=jax.ShapeDtypeStruct((TN, H), jnp.float32),
        grid_spec=pltpu.PrefetchScalarGridSpec(
            num_scalar_prefetch=0,
            grid=(1,),
            in_specs=[
                pl.BlockSpec((TN, H), full),       # node features slab
                pl.BlockSpec((TN, TN), full),      # block-diag additive mask
                pl.BlockSpec((H, 2), full),        # fused attention weights
                pl.BlockSpec((H, H), full),        # w_nh
                pl.BlockSpec((H, H), full),        # w_nm
                pl.BlockSpec((1, H), full),        # b_node
            ],
            out_specs=pl.BlockSpec((TN, H), full),
        ),
        compiler_params=pltpu.CompilerParams(
            dimension_semantics=("arbitrary",)),
        cost_estimate=cost,
    )(h_all, bias, w_attn, w_nh, w_nm, b_node)

    # (T*N, H) -> (N, T, H)   (wrapper-side layout plumbing, free in XLA)
    return jnp.transpose(out2.reshape(T, N, H), (1, 0, 2))


def _reference(nf_nth, adj, params):
    """Pure-JAX reference of the same forward pass (for sanity checking)."""
    w_src, w_dst, b_attn, w_nh, w_nm, b_node = params
    outs = []
    for t in range(nf_nth.shape[1]):
        h = nf_nth[:, t, :]
        e = (h @ w_dst) + (h @ w_src).T + b_attn[0, 0]
        e = jnp.where(adj > 0, e, -1e9)
        p = jnp.exp(e - jnp.max(e, axis=-1, keepdims=True)) * (adj > 0)
        alpha = p / jnp.sum(p, axis=-1, keepdims=True)
        msg = alpha @ h
        outs.append(jnp.maximum(h @ w_nh + msg @ w_nm + b_node, 0.0)[:, None, :])
    return jnp.concatenate(outs, axis=1)


if __name__ == "__main__":
    N, T, H = 16, 8, 32                            # nodes, slices, hidden dim

    key = jax.random.PRNGKey(0)
    k_nf, k_adj, k1, k2, k3, k4, k5 = jax.random.split(key, 7)

    # node features (N, T, H) — matches nf with nf.size(1) == T
    nf = jax.random.normal(k_nf, (N, T, H), dtype=jnp.float32)

    # dense adjacency with self-loops (adj[i, j] = edge j -> i)
    adj = (jax.random.uniform(k_adj, (N, N)) < 0.3).astype(jnp.float32)
    adj = jnp.maximum(adj, jnp.eye(N, dtype=jnp.float32))

    # deterministic parameter init (attn_model: Linear(2H -> 1),
    # node_model: Linear(2H -> H) + ReLU)
    scale = 1.0 / np.sqrt(2 * H)
    w_src = jax.random.normal(k1, (H, 1), dtype=jnp.float32) * scale
    w_dst = jax.random.normal(k2, (H, 1), dtype=jnp.float32) * scale
    b_attn = jnp.zeros((1, 1), dtype=jnp.float32)
    w_nh = jax.random.normal(k3, (H, H), dtype=jnp.float32) * scale
    w_nm = jax.random.normal(k4, (H, H), dtype=jnp.float32) * scale
    b_node = jax.random.normal(k5, (1, H), dtype=jnp.float32) * 0.01
    params = (w_src, w_dst, b_attn, w_nh, w_nm, b_node)

    out = gnn_block_forward(nf, adj, params)
    out = jax.block_until_ready(out)

    ref = jax.block_until_ready(_reference(nf, adj, params))
    assert out.shape == (N, T, H)
    np.testing.assert_allclose(np.asarray(out), np.asarray(ref),
                               rtol=1e-3, atol=1e-3)
    print("KERNEL_OK")
</pallas_src>

<mosaic_0001>
module attributes {stable_mosaic.version = 11 : i64} {
  func.func @_gnn_kernel(%arg0: i32, %arg1: memref<128x32xf32, #tpu.memory_space<vmem>>, %arg2: memref<128x128xf32, #tpu.memory_space<vmem>>, %arg3: memref<32x2xf32, #tpu.memory_space<vmem>>, %arg4: memref<32x32xf32, #tpu.memory_space<vmem>>, %arg5: memref<32x32xf32, #tpu.memory_space<vmem>>, %arg6: memref<1x32xf32, #tpu.memory_space<vmem>>, %arg7: memref<128x32xf32, #tpu.memory_space<vmem>>) attributes {dimension_semantics = [#tpu.dimension_semantics<arbitrary>], iteration_bounds = array<i64: 1>, scalar_prefetch = 0 : i64, scratch_operands = 0 : i64, tpu.core_type = #tpu.core_type<tc>, window_params = [{pipeline_mode = #tpu.pipeline_mode<synchronous>, transform_indices = @transform_0, window_bounds = array<i64: 128, 32>}, {pipeline_mode = #tpu.pipeline_mode<synchronous>, transform_indices = @transform_1, window_bounds = array<i64: 128, 128>}, {pipeline_mode = #tpu.pipeline_mode<synchronous>, transform_indices = @transform_2, window_bounds = array<i64: 32, 2>}, {pipeline_mode = #tpu.pipeline_mode<synchronous>, transform_indices = @transform_3, window_bounds = array<i64: 32, 32>}, {pipeline_mode = #tpu.pipeline_mode<synchronous>, transform_indices = @transform_4, window_bounds = array<i64: 32, 32>}, {pipeline_mode = #tpu.pipeline_mode<synchronous>, transform_indices = @transform_5, window_bounds = array<i64: 1, 32>}, {pipeline_mode = #tpu.pipeline_mode<synchronous>, transform_indices = @transform_6, window_bounds = array<i64: 128, 32>}]} {
    %c0 = arith.constant 0 : index
    %c0_0 = arith.constant 0 : index
    %0 = vector.load %arg1[%c0, %c0_0] : memref<128x32xf32, #tpu.memory_space<vmem>>, vector<128x32xf32>
    %c0_1 = arith.constant 0 : index
    %c0_2 = arith.constant 0 : index
    %1 = vector.load %arg2[%c0_1, %c0_2] : memref<128x128xf32, #tpu.memory_space<vmem>>, vector<128x128xf32>
    %c0_3 = arith.constant 0 : index
    %c0_4 = arith.constant 0 : index
    %2 = vector.load %arg3[%c0_3, %c0_4] : memref<32x2xf32, #tpu.memory_space<vmem>>, vector<32x2xf32>
    %c0_5 = arith.constant 0 : index
    %c0_6 = arith.constant 0 : index
    %3 = vector.load %arg4[%c0_5, %c0_6] : memref<32x32xf32, #tpu.memory_space<vmem>>, vector<32x32xf32>
    %c0_7 = arith.constant 0 : index
    %c0_8 = arith.constant 0 : index
    %4 = vector.load %arg5[%c0_7, %c0_8] : memref<32x32xf32, #tpu.memory_space<vmem>>, vector<32x32xf32>
    %c0_9 = arith.constant 0 : index
    %c0_10 = arith.constant 0 : index
    %5 = vector.load %arg6[%c0_9, %c0_10] : memref<1x32xf32, #tpu.memory_space<vmem>>, vector<1x32xf32>
    %cst = arith.constant dense<0.000000e+00> : vector<128x2xf32>
    %6 = tpu.matmul %0, %2, %cst {dimension_numbers = #tpu.dot_dimension_numbers<[1], [0], [0], [1], [0, 0, 1, 1], [], []>} : vector<128x32xf32>, vector<32x2xf32>, vector<128x2xf32> -> vector<128x2xf32>
    %7 = vector.extract_strided_slice %6 {offsets = [0, 0], sizes = [128, 1], strides = [1, 1]} : vector<128x2xf32> to vector<128x1xf32>
    %8 = vector.extract_strided_slice %6 {offsets = [0, 1], sizes = [128, 1], strides = [1, 1]} : vector<128x2xf32> to vector<128x1xf32>
    %9 = tpu.transpose %8, [1, 0] : vector<128x1xf32> -> vector<1x128xf32>
    %10 = vector.broadcast %7 : vector<128x1xf32> to vector<128x128xf32>
    %11 = vector.broadcast %9 : vector<1x128xf32> to vector<128x128xf32>
    %12 = arith.addf %10, %11 : vector<128x128xf32>
    %13 = arith.addf %12, %1 : vector<128x128xf32>
    %cst_11 = arith.constant dense<0xFF800000> : vector<128xf32>
    %14 = vector.multi_reduction <maximumf>, %13, %cst_11 [1] : vector<128x128xf32> to vector<128xf32>
    %15 = vector.shape_cast %14 : vector<128xf32> to vector<128x1xf32>
    %16 = vector.broadcast %15 : vector<128x1xf32> to vector<128x128xf32>
    %17 = arith.subf %13, %16 : vector<128x128xf32>
    %18 = math.exp %17 : vector<128x128xf32>
    %cst_12 = arith.constant dense<0.000000e+00> : vector<128xf32>
    %19 = vector.multi_reduction <add>, %18, %cst_12 [1] : vector<128x128xf32> to vector<128xf32>
    %20 = vector.shape_cast %19 : vector<128xf32> to vector<128x1xf32>
    %21 = vector.broadcast %20 : vector<128x1xf32> to vector<128x128xf32>
    %22 = arith.divf %18, %21 : vector<128x128xf32>
    %cst_13 = arith.constant dense<0.000000e+00> : vector<128x32xf32>
    %23 = tpu.matmul %22, %0, %cst_13 {dimension_numbers = #tpu.dot_dimension_numbers<[1], [0], [0], [1], [0, 0, 1, 1], [], []>} : vector<128x128xf32>, vector<128x32xf32>, vector<128x32xf32> -> vector<128x32xf32>
    %cst_14 = arith.constant dense<0.000000e+00> : vector<128x32xf32>
    %24 = tpu.matmul %0, %3, %cst_14 {dimension_numbers = #tpu.dot_dimension_numbers<[1], [0], [0], [1], [0, 0, 1, 1], [], []>} : vector<128x32xf32>, vector<32x32xf32>, vector<128x32xf32> -> vector<128x32xf32>
    %cst_15 = arith.constant dense<0.000000e+00> : vector<128x32xf32>
    %25 = tpu.matmul %23, %4, %cst_15 {dimension_numbers = #tpu.dot_dimension_numbers<[1], [0], [0], [1], [0, 0, 1, 1], [], []>} : vector<128x32xf32>, vector<32x32xf32>, vector<128x32xf32> -> vector<128x32xf32>
    %26 = arith.addf %24, %25 : vector<128x32xf32>
    %27 = vector.broadcast %5 : vector<1x32xf32> to vector<128x32xf32>
    %28 = arith.addf %26, %27 : vector<128x32xf32>
    %cst_16 = arith.constant 0.000000e+00 : f32
    %29 = vector.broadcast %cst_16 : f32 to vector<128x32xf32>
    %30 = arith.maximumf %28, %29 : vector<128x32xf32>
    %c0_17 = arith.constant 0 : index
    %c0_18 = arith.constant 0 : index
    %31 = vector.load %arg7[%c0_17, %c0_18] : memref<128x32xf32, #tpu.memory_space<vmem>>, vector<128x32xf32>
    tpu.vector_store %arg7[%c0_17, %c0_18], %30 {strides = array<i32>} : memref<128x32xf32, #tpu.memory_space<vmem>>, vector<128x32xf32>,
    return
  }
  func.func @transform_0(%arg0: i32) -> (i32, i32) {
    %c0_i32 = arith.constant 0 : i32
    %c0_i32_0 = arith.constant 0 : i32
    %c0_i32_1 = arith.constant 0 : i32
    return %c0_i32, %c0_i32_0 : i32, i32
  }
  func.func @transform_1(%arg0: i32) -> (i32, i32) {
    %c0_i32 = arith.constant 0 : i32
    %c0_i32_0 = arith.constant 0 : i32
    %c0_i32_1 = arith.constant 0 : i32
    return %c0_i32, %c0_i32_0 : i32, i32
  }
  func.func @transform_2(%arg0: i32) -> (i32, i32) {
    %c0_i32 = arith.constant 0 : i32
    %c0_i32_0 = arith.constant 0 : i32
    %c0_i32_1 = arith.constant 0 : i32
    return %c0_i32, %c0_i32_0 : i32, i32
  }
  func.func @transform_3(%arg0: i32) -> (i32, i32) {
    %c0_i32 = arith.constant 0 : i32
    %c0_i32_0 = arith.constant 0 : i32
    %c0_i32_1 = arith.constant 0 : i32
    return %c0_i32, %c0_i32_0 : i32, i32
  }
  func.func @transform_4(%arg0: i32) -> (i32, i32) {
    %c0_i32 = arith.constant 0 : i32
    %c0_i32_0 = arith.constant 0 : i32
    %c0_i32_1 = arith.constant 0 : i32
    return %c0_i32, %c0_i32_0 : i32, i32
  }
  func.func @transform_5(%arg0: i32) -> (i32, i32) {
    %c0_i32 = arith.constant 0 : i32
    %c0_i32_0 = arith.constant 0 : i32
    %c0_i32_1 = arith.constant 0 : i32
    return %c0_i32, %c0_i32_0 : i32, i32
  }
  func.func @transform_6(%arg0: i32) -> (i32, i32) {
    %c0_i32 = arith.constant 0 : i32
    %c0_i32_0 = arith.constant 0 : i32
    %c0_i32_1 = arith.constant 0 : i32
    return %c0_i32, %c0_i32_0 : i32, i32
  }
}

</mosaic_0001>

<llo_original>
// kernel: tpu_custom_call.1
$region0: #{tpu_custom_call.1}
  #allocation0 [shape = 'u32[]', space=smem, size = 0x4, offset = 0x4, fixed_abs, tag = 'smem constant byte address 0x4 - core index']
  #allocation1 [shape = 'u32[72,128]{1,0:T(1,128)}', space=vmem, size = 0x9000, scoped, tag = 'internal scratch']
  %s0 = inlined_call_operand.vmem [shape: f32[128,32], index: 0, kind: input, shape index: {}]
  %s1 = inlined_call_operand.vmem [shape: f32[128,128], index: 1, kind: input, shape index: {}]
  %s2 = inlined_call_operand.vmem [shape: f32[32,2], index: 2, kind: input, shape index: {}]
  %s3 = inlined_call_operand.vmem [shape: f32[32,32], index: 3, kind: input, shape index: {}]
  %s4 = inlined_call_operand.vmem [shape: f32[32,32], index: 4, kind: input, shape index: {}]
  %s5 = inlined_call_operand.vmem [shape: f32[1,32], index: 5, kind: input, shape index: {}]
  %s6 = inlined_call_operand.vmem [shape: f32[128,32], index: 6, kind: output, shape index: {}]
  %s7 = sld [smem:[#allocation0]]
  $region34: #{tpu_custom_call.1} parent=0
    _
  %s9 = ssub.s32 1, %s7
  %s10 = scalar_select 0, %s9, %s7
  // Predicated region
  $region2: #{tpu_custom_call.1} parent=0 // pred_check
    _
  $region3: #{tpu_custom_call.1} parent=0 // pred_check_branch
    %12 = sbr.rel (0) target = $region5
  $region4: #{tpu_custom_call.1} parent=0 // pred_region
    _
  $region5: #{tpu_custom_call.1} parent=0 // pred_fallthru
    _
  // Predicated region
  $region6: #{tpu_custom_call.1} parent=0 // pred_check
    _
  $region7: #{tpu_custom_call.1} parent=0 // pred_check_branch
    %14 = sbr.rel (0) target = $region9
  $region8: #{tpu_custom_call.1} parent=0 // pred_region
    _
  $region9: #{tpu_custom_call.1} parent=0 // pred_fallthru
    _
  // Predicated region
  $region10: #{tpu_custom_call.1} parent=0 // pred_check
    _
  $region11: #{tpu_custom_call.1} parent=0 // pred_check_branch
    %16 = sbr.rel (0) target = $region13
  $region12: #{tpu_custom_call.1} parent=0 // pred_region
    _
  $region13: #{tpu_custom_call.1} parent=0 // pred_fallthru
    _
  // Predicated region
  $region14: #{tpu_custom_call.1} parent=0 // pred_check
    _
  $region15: #{tpu_custom_call.1} parent=0 // pred_check_branch
    %18 = sbr.rel (0) target = $region17
  $region16: #{tpu_custom_call.1} parent=0 // pred_region
    _
  $region17: #{tpu_custom_call.1} parent=0 // pred_fallthru
    _
  // Predicated region
  $region18: #{tpu_custom_call.1} parent=0 // pred_check
    _
  $region19: #{tpu_custom_call.1} parent=0 // pred_check_branch
    %20 = sbr.rel (0) target = $region21
  $region20: #{tpu_custom_call.1} parent=0 // pred_region
    _
  $region21: #{tpu_custom_call.1} parent=0 // pred_fallthru
    _
  // Predicated region
  $region22: #{tpu_custom_call.1} parent=0 // pred_check
    _
  $region23: #{tpu_custom_call.1} parent=0 // pred_check_branch
    %22 = sbr.rel (0) target = $region25
  $region24: #{tpu_custom_call.1} parent=0 // pred_region
    _
  $region25: #{tpu_custom_call.1} parent=0 // pred_fallthru
    _
  %v23 = vld [vmem:[%s0] sm:$0xff]
  %v24 = vld [vmem:[%s0 + $0x8] sm:$0xff]
  %v25 = vld [vmem:[%s0 + $0x10] sm:$0xff]
  %v26 = vld [vmem:[%s0 + $0x18] sm:$0xff]
  %v27 = vld [vmem:[%s0 + $0x20] sm:$0xff]
  %v28 = vld [vmem:[%s0 + $0x28] sm:$0xff]
  %v29 = vld [vmem:[%s0 + $0x30] sm:$0xff]
  %v30 = vld [vmem:[%s0 + $0x38] sm:$0xff]
  %v31 = vld [vmem:[%s0 + $0x40] sm:$0xff]
  %v32 = vld [vmem:[%s0 + $0x48] sm:$0xff]
  %v33 = vld [vmem:[%s0 + $0x50] sm:$0xff]
  %v34 = vld [vmem:[%s0 + $0x58] sm:$0xff]
  %v35 = vld [vmem:[%s0 + $0x60] sm:$0xff]
  %v36 = vld [vmem:[%s0 + $0x68] sm:$0xff]
  %v37 = vld [vmem:[%s0 + $0x70] sm:$0xff]
  %v38 = vld [vmem:[%s0 + $0x78] sm:$0xff]
  %v39 = vld [vmem:[%s1] sm:$0xff]
  %v40 = vld [vmem:[%s1 + $0x8] sm:$0xff]
  %v41 = vld [vmem:[%s1 + $0x10] sm:$0xff]
  %v42 = vld [vmem:[%s1 + $0x18] sm:$0xff]
  %v43 = vld [vmem:[%s1 + $0x20] sm:$0xff]
  %v44 = vld [vmem:[%s1 + $0x28] sm:$0xff]
  %v45 = vld [vmem:[%s1 + $0x30] sm:$0xff]
  %v46 = vld [vmem:[%s1 + $0x38] sm:$0xff]
  %v47 = vld [vmem:[%s1 + $0x40] sm:$0xff]
  %v48 = vld [vmem:[%s1 + $0x48] sm:$0xff]
  %v49 = vld [vmem:[%s1 + $0x50] sm:$0xff]
  %v50 = vld [vmem:[%s1 + $0x58] sm:$0xff]
  %v51 = vld [vmem:[%s1 + $0x60] sm:$0xff]
  %v52 = vld [vmem:[%s1 + $0x68] sm:$0xff]
  %v53 = vld [vmem:[%s1 + $0x70] sm:$0xff]
  %v54 = vld [vmem:[%s1 + $0x78] sm:$0xff]
  %v55 = vld [vmem:[%s2] sm:$0xff]
  %v56 = vld [vmem:[%s2 + $0x8] sm:$0xff]
  %v57 = vld [vmem:[%s2 + $0x10] sm:$0xff]
  %v58 = vld [vmem:[%s2 + $0x18] sm:$0xff]
  %v59 = vld [vmem:[%s3] sm:$0xff]
  %v60 = vld [vmem:[%s3 + $0x8] sm:$0xff]
  %v61 = vld [vmem:[%s3 + $0x10] sm:$0xff]
  %v62 = vld [vmem:[%s3 + $0x18] sm:$0xff]
  %v63 = vld [vmem:[%s4] sm:$0xff]
  %v64 = vld [vmem:[%s4 + $0x8] sm:$0xff]
  %v65 = vld [vmem:[%s4 + $0x10] sm:$0xff]
  %v66 = vld [vmem:[%s4 + $0x18] sm:$0xff]
  %v67 = vld [vmem:[%s5] sm:$0x1]
  %vm68 = vcmask 261120
  %v70 = vsel %vm68, %v23, 0
  %v73 = vsel %vm68, %v24, 0
  %v76 = vsel %vm68, %v25, 0
  %v79 = vsel %vm68, %v26, 0
  %v82 = vsel %vm68, %v27, 0
  %v85 = vsel %vm68, %v28, 0
  %v88 = vsel %vm68, %v29, 0
  %v91 = vsel %vm68, %v30, 0
  %v94 = vsel %vm68, %v31, 0
  %v97 = vsel %vm68, %v32, 0
  %v100 = vsel %vm68, %v33, 0
  %v103 = vsel %vm68, %v34, 0
  %v106 = vsel %vm68, %v35, 0
  %v109 = vsel %vm68, %v36, 0
  %v112 = vsel %vm68, %v37, 0
  %v115 = vsel %vm68, %v38, 0
  %117 = vmatpush.msra.mxu0 0.0
  %118 = vmatpush.msra.mxu0 0.0
  %119 = vmatpush.msra.mxu0 0.0
  %120 = vmatpush.msra.mxu0 0.0
  %121 = vmatpush.msra.mxu0 0.0
  %122 = vmatpush.msra.mxu0 0.0
  %123 = vmatpush.msra.mxu0 0.0
  %124 = vmatpush.msra.mxu0 0.0
  %125 = vmatpush.msra.mxu0 0.0
  %126 = vmatpush.msra.mxu0 0.0
  %127 = vmatpush.msra.mxu0 0.0
  %128 = vmatpush.msra.mxu0 0.0
  %129 = vmatpush.msra.mxu0 %v58
  %130 = vmatpush.msra.mxu0 %v57
  %131 = vmatpush.msra.mxu0 %v56
  %132 = vmatpush.msra.mxu0 %v55
  %133 = vmatmul.f32.gmra.mxu0 %v70
  %v134 = vpop.f32.mrf.mxu0
  %v135 = vadd.f32 0.0, %v134
  %136 = vmatmul.f32.gmra.mxu0 %v73
  %v137 = vpop.f32.mrf.mxu0
  %v138 = vadd.f32 0.0, %v137
  %139 = vmatmul.f32.gmra.mxu0 %v76
  %v140 = vpop.f32.mrf.mxu0
  %v141 = vadd.f32 0.0, %v140
  %142 = vmatmul.f32.gmra.mxu0 %v79
  %v143 = vpop.f32.mrf.mxu0
  %v144 = vadd.f32 0.0, %v143
  %145 = vmatmul.f32.gmra.mxu0 %v82
  %v146 = vpop.f32.mrf.mxu0
  %v147 = vadd.f32 0.0, %v146
  %148 = vmatmul.f32.gmra.mxu0 %v85
  %v149 = vpop.f32.mrf.mxu0
  %v150 = vadd.f32 0.0, %v149
  %151 = vmatmul.f32.gmra.mxu0 %v88
  %v152 = vpop.f32.mrf.mxu0
  %v153 = vadd.f32 0.0, %v152
  %154 = vmatmul.f32.gmra.mxu0 %v91
  %v155 = vpop.f32.mrf.mxu0
  %v156 = vadd.f32 0.0, %v155
  %157 = vmatmul.f32.gmra.mxu0 %v94
  %v158 = vpop.f32.mrf.mxu0
  %v159 = vadd.f32 0.0, %v158
  %160 = vmatmul.f32.gmra.mxu0 %v97
  %v161 = vpop.f32.mrf.mxu0
  %v162 = vadd.f32 0.0, %v161
  %163 = vmatmul.f32.gmra.mxu0 %v100
  %v164 = vpop.f32.mrf.mxu0
  %v165 = vadd.f32 0.0, %v164
  %166 = vmatmul.f32.gmra.mxu0 %v103
  %v167 = vpop.f32.mrf.mxu0
  %v168 = vadd.f32 0.0, %v167
  %169 = vmatmul.f32.gmra.mxu0 %v106
  %v170 = vpop.f32.mrf.mxu0
  %v171 = vadd.f32 0.0, %v170
  %172 = vmatmul.f32.gmra.mxu0 %v109
  %v173 = vpop.f32.mrf.mxu0
  %v174 = vadd.f32 0.0, %v173
  %175 = vmatmul.f32.gmra.mxu0 %v112
  %v176 = vpop.f32.mrf.mxu0
  %v177 = vadd.f32 0.0, %v176
  %178 = vmatmul.f32.gmra.mxu0 %v115
  %v179 = vpop.f32.mrf.mxu0
  %v180 = vadd.f32 0.0, %v179
  %181 = vdwg.mxu0
  %198 = vrot.lane.b32.xlu0 %v135, 127
  %v199 = vpop.permute.xlu0 %198
  %200 = vrot.lane.b32.xlu0 %v138, 127
  %v201 = vpop.permute.xlu0 %200
  %202 = vrot.lane.b32.xlu0 %v141, 127
  %v203 = vpop.permute.xlu0 %202
  %204 = vrot.lane.b32.xlu0 %v144, 127
  %v205 = vpop.permute.xlu0 %204
  %206 = vrot.lane.b32.xlu0 %v147, 127
  %v207 = vpop.permute.xlu0 %206
  %208 = vrot.lane.b32.xlu0 %v150, 127
  %v209 = vpop.permute.xlu0 %208
  %210 = vrot.lane.b32.xlu0 %v153, 127
  %v211 = vpop.permute.xlu0 %210
  %212 = vrot.lane.b32.xlu0 %v156, 127
  %v213 = vpop.permute.xlu0 %212
  %214 = vrot.lane.b32.xlu0 %v159, 127
  %v215 = vpop.permute.xlu0 %214
  %216 = vrot.lane.b32.xlu0 %v162, 127
  %v217 = vpop.permute.xlu0 %216
  %218 = vrot.lane.b32.xlu0 %v165, 127
  %v219 = vpop.permute.xlu0 %218
  %220 = vrot.lane.b32.xlu0 %v168, 127
  %v221 = vpop.permute.xlu0 %220
  %222 = vrot.lane.b32.xlu0 %v171, 127
  %v223 = vpop.permute.xlu0 %222
  %224 = vrot.lane.b32.xlu0 %v174, 127
  %v225 = vpop.permute.xlu0 %224
  %226 = vrot.lane.b32.xlu0 %v177, 127
  %v227 = vpop.permute.xlu0 %226
  %228 = vrot.lane.b32.xlu0 %v180, 127
  %v229 = vpop.permute.xlu0 %228
  %246 = vxpose.xlu0.b32.start [1/16] %v199, 128
  %247 = vxpose.xlu0.b32.cont [2/16] %v201, 128
  %248 = vxpose.xlu0.b32.cont [3/16] %v203, 128
  %249 = vxpose.xlu0.b32.cont [4/16] %v205, 128
  %250 = vxpose.xlu0.b32.cont [5/16] %v207, 128
  %251 = vxpose.xlu0.b32.cont [6/16] %v209, 128
  %252 = vxpose.xlu0.b32.cont [7/16] %v211, 128
  %253 = vxpose.xlu0.b32.cont [8/16] %v213, 128
  %254 = vxpose.xlu0.b32.cont [9/16] %v215, 128
  %255 = vxpose.xlu0.b32.cont [10/16] %v217, 128
  %256 = vxpose.xlu0.b32.cont [11/16] %v219, 128
  %257 = vxpose.xlu0.b32.cont [12/16] %v221, 128
  %258 = vxpose.xlu0.b32.cont [13/16] %v223, 128
  %259 = vxpose.xlu0.b32.cont [14/16] %v225, 128
  %260 = vxpose.xlu0.b32.cont [15/16] %v227, 128
  %261 = vxpose.xlu0.b32.end [16/16] %v229, 128
  %v262 = vpop.trf.xlu0
  %v263 = vpop.trf.xlu0
  %v264 = vpop.trf.xlu0
  %v265 = vpop.trf.xlu0
  %v266 = vpop.trf.xlu0
  %v267 = vpop.trf.xlu0
  %v268 = vpop.trf.xlu0
  %v269 = vpop.trf.xlu0
  %v270 = vpop.trf.xlu0
  %v271 = vpop.trf.xlu0
  %v272 = vpop.trf.xlu0
  %v273 = vpop.trf.xlu0
  %v274 = vpop.trf.xlu0
  %v275 = vpop.trf.xlu0
  %v276 = vpop.trf.xlu0
  %v277 = vpop.trf.xlu0
  %278 = vset.pattern.permute.xlu0 0
  %279 = vperm.xlu0 %278, %v135
  %v280 = vpop.permute.xlu0 %279
  %282 = vset.pattern.permute.xlu0 0
  %283 = vperm.xlu0 %282, %v138
  %v284 = vpop.permute.xlu0 %283
  %286 = vset.pattern.permute.xlu0 0
  %287 = vperm.xlu0 %286, %v141
  %v288 = vpop.permute.xlu0 %287
  %290 = vset.pattern.permute.xlu0 0
  %291 = vperm.xlu0 %290, %v144
  %v292 = vpop.permute.xlu0 %291
  %294 = vset.pattern.permute.xlu0 0
  %295 = vperm.xlu0 %294, %v147
  %v296 = vpop.permute.xlu0 %295
  %298 = vset.pattern.permute.xlu0 0
  %299 = vperm.xlu0 %298, %v150
  %v300 = vpop.permute.xlu0 %299
  %302 = vset.pattern.permute.xlu0 0
  %303 = vperm.xlu0 %302, %v153
  %v304 = vpop.permute.xlu0 %303
  %306 = vset.pattern.permute.xlu0 0
  %307 = vperm.xlu0 %306, %v156
  %v308 = vpop.permute.xlu0 %307
  %310 = vset.pattern.permute.xlu0 0
  %311 = vperm.xlu0 %310, %v159
  %v312 = vpop.permute.xlu0 %311
  %314 = vset.pattern.permute.xlu0 0
  %315 = vperm.xlu0 %314, %v162
  %v316 = vpop.permute.xlu0 %315
  %318 = vset.pattern.permute.xlu0 0
  %319 = vperm.xlu0 %318, %v165
  %v320 = vpop.permute.xlu0 %319
  %322 = vset.pattern.permute.xlu0 0
  %323 = vperm.xlu0 %322, %v168
  %v324 = vpop.permute.xlu0 %323
  %326 = vset.pattern.permute.xlu0 0
  %327 = vperm.xlu0 %326, %v171
  %v328 = vpop.permute.xlu0 %327
  %330 = vset.pattern.permute.xlu0 0
  %331 = vperm.xlu0 %330, %v174
  %v332 = vpop.permute.xlu0 %331
  %334 = vset.pattern.permute.xlu0 0
  %335 = vperm.xlu0 %334, %v177
  %v336 = vpop.permute.xlu0 %335
  %338 = vset.pattern.permute.xlu0 0
  %339 = vperm.xlu0 %338, %v180
  %v340 = vpop.permute.xlu0 %339
  %v342 = vperm.slane %v262, 0
  %v343 = vadd.f32 %v280, %v342
  %v344 = vadd.f32 %v284, %v342
  %v345 = vadd.f32 %v288, %v342
  %v346 = vadd.f32 %v292, %v342
  %v347 = vadd.f32 %v296, %v342
  %v348 = vadd.f32 %v300, %v342
  %v349 = vadd.f32 %v304, %v342
  %v350 = vadd.f32 %v308, %v342
  %v351 = vadd.f32 %v312, %v342
  %v352 = vadd.f32 %v316, %v342
  %v353 = vadd.f32 %v320, %v342
  %v354 = vadd.f32 %v324, %v342
  %v355 = vadd.f32 %v328, %v342
  %v356 = vadd.f32 %v332, %v342
  %v357 = vadd.f32 %v336, %v342
  %v358 = vadd.f32 %v340, %v342
  %v359 = vadd.f32 %v343, %v39
  %v360 = vadd.f32 %v344, %v40
  %v361 = vadd.f32 %v345, %v41
  %v362 = vadd.f32 %v346, %v42
  %v363 = vadd.f32 %v347, %v43
  %v364 = vadd.f32 %v348, %v44
  %v365 = vadd.f32 %v349, %v45
  %v366 = vadd.f32 %v350, %v46
  %v367 = vadd.f32 %v351, %v47
  %v368 = vadd.f32 %v352, %v48
  %v369 = vadd.f32 %v353, %v49
  %v370 = vadd.f32 %v354, %v50
  %v371 = vadd.f32 %v355, %v51
  %v372 = vadd.f32 %v356, %v52
  %v373 = vadd.f32 %v357, %v53
  %v374 = vadd.f32 %v358, %v54
  %375 = vmax.xlane.f32.xlu0 %v359
  %v376 = vpop.xlane.xlu0 %375
  %377 = vmax.xlane.f32.xlu0 %v360
  %v378 = vpop.xlane.xlu0 %377
  %379 = vmax.xlane.f32.xlu0 %v361
  %v380 = vpop.xlane.xlu0 %379
  %381 = vmax.xlane.f32.xlu0 %v362
  %v382 = vpop.xlane.xlu0 %381
  %383 = vmax.xlane.f32.xlu0 %v363
  %v384 = vpop.xlane.xlu0 %383
  %385 = vmax.xlane.f32.xlu0 %v364
  %v386 = vpop.xlane.xlu0 %385
  %387 = vmax.xlane.f32.xlu0 %v365
  %v388 = vpop.xlane.xlu0 %387
  %389 = vmax.xlane.f32.xlu0 %v366
  %v390 = vpop.xlane.xlu0 %389
  %391 = vmax.xlane.f32.xlu0 %v367
  %v392 = vpop.xlane.xlu0 %391
  %393 = vmax.xlane.f32.xlu0 %v368
  %v394 = vpop.xlane.xlu0 %393
  %395 = vmax.xlane.f32.xlu0 %v369
  %v396 = vpop.xlane.xlu0 %395
  %397 = vmax.xlane.f32.xlu0 %v370
  %v398 = vpop.xlane.xlu0 %397
  %399 = vmax.xlane.f32.xlu0 %v371
  %v400 = vpop.xlane.xlu0 %399
  %401 = vmax.xlane.f32.xlu0 %v372
  %v402 = vpop.xlane.xlu0 %401
  %403 = vmax.xlane.f32.xlu0 %v373
  %v404 = vpop.xlane.xlu0 %403
  %405 = vmax.xlane.f32.xlu0 %v374
  %v406 = vpop.xlane.xlu0 %405
  %v407 = vsub.f32 %v359, %v376
  %v408 = vsub.f32 %v360, %v378
  %v409 = vsub.f32 %v361, %v380
  %v410 = vsub.f32 %v362, %v382
  %v411 = vsub.f32 %v363, %v384
  %v412 = vsub.f32 %v364, %v386
  %v413 = vsub.f32 %v365, %v388
  %v414 = vsub.f32 %v366, %v390
  %v415 = vsub.f32 %v367, %v392
  %v416 = vsub.f32 %v368, %v394
  %v417 = vsub.f32 %v369, %v396
  %v418 = vsub.f32 %v370, %v398
  %v419 = vsub.f32 %v371, %v400
  %v420 = vsub.f32 %v372, %v402
  %v421 = vsub.f32 %v373, %v404
  %v422 = vsub.f32 %v374, %v406
  %v423 = vmul.f32 %v407, 1.442695
  %v424 = vpow.pop %v423
  %v425 = vmul.f32 %v408, 1.442695
  %v426 = vpow.pop %v425
  %v427 = vmul.f32 %v409, 1.442695
  %v428 = vpow.pop %v427
  %v429 = vmul.f32 %v410, 1.442695
  %v430 = vpow.pop %v429
  %v431 = vmul.f32 %v411, 1.442695
  %v432 = vpow.pop %v431
  %v433 = vmul.f32 %v412, 1.442695
  %v434 = vpow.pop %v433
  %v435 = vmul.f32 %v413, 1.442695
  %v436 = vpow.pop %v435
  %v437 = vmul.f32 %v414, 1.442695
  %v438 = vpow.pop %v437
  %v439 = vmul.f32 %v415, 1.442695
  %v440 = vpow.pop %v439
  %v441 = vmul.f32 %v416, 1.442695
  %v442 = vpow.pop %v441
  %v443 = vmul.f32 %v417, 1.442695
  %v444 = vpow.pop %v443
  %v445 = vmul.f32 %v418, 1.442695
  %v446 = vpow.pop %v445
  %v447 = vmul.f32 %v419, 1.442695
  %v448 = vpow.pop %v447
  %v449 = vmul.f32 %v420, 1.442695
  %v450 = vpow.pop %v449
  %v451 = vmul.f32 %v421, 1.442695
  %v452 = vpow.pop %v451
  %v453 = vmul.f32 %v422, 1.442695
  %v454 = vpow.pop %v453
  %455 = vadd.xlane.f32.xlu0 %v424
  %v456 = vpop.xlane.xlu0 %455
  %457 = vadd.xlane.f32.xlu0 %v426
  %v458 = vpop.xlane.xlu0 %457
  %459 = vadd.xlane.f32.xlu0 %v428
  %v460 = vpop.xlane.xlu0 %459
  %461 = vadd.xlane.f32.xlu0 %v430
  %v462 = vpop.xlane.xlu0 %461
  %463 = vadd.xlane.f32.xlu0 %v432
  %v464 = vpop.xlane.xlu0 %463
  %465 = vadd.xlane.f32.xlu0 %v434
  %v466 = vpop.xlane.xlu0 %465
  %467 = vadd.xlane.f32.xlu0 %v436
  %v468 = vpop.xlane.xlu0 %467
  %469 = vadd.xlane.f32.xlu0 %v438
  %v470 = vpop.xlane.xlu0 %469
  %471 = vadd.xlane.f32.xlu0 %v440
  %v472 = vpop.xlane.xlu0 %471
  %473 = vadd.xlane.f32.xlu0 %v442
  %v474 = vpop.xlane.xlu0 %473
  %475 = vadd.xlane.f32.xlu0 %v444
  %v476 = vpop.xlane.xlu0 %475
  %477 = vadd.xlane.f32.xlu0 %v446
  %v478 = vpop.xlane.xlu0 %477
  %479 = vadd.xlane.f32.xlu0 %v448
  %v480 = vpop.xlane.xlu0 %479
  %481 = vadd.xlane.f32.xlu0 %v450
  %v482 = vpop.xlane.xlu0 %481
  %483 = vadd.xlane.f32.xlu0 %v452
  %v484 = vpop.xlane.xlu0 %483
  %485 = vadd.xlane.f32.xlu0 %v454
  %v486 = vpop.xlane.xlu0 %485
  %v487 = vrcp.pop %v456
  %v488 = vmul.f32 %v456, %v487
  %v489 = vsub.f32 1.0, %v488
  %v490 = vmul.f32 %v487, %v489
  %v491 = vadd.f32 %v487, %v490
  %vm492 = vweird.f32 %v456
  %vm493 = vweird.f32 %v487
  %vm494 = vmor %vm492, %vm493
  %v495 = vsel %vm494, %v487, %v491
  %v496 = vand.u32 2147483647, %v456
  %vm497 = vcmp.eq.f32.partialorder %v496, 8.507059e+37
  %v498 = vand.u32 %v456, 2147483648
  %v499 = vor.u32 1.1754944e-38, %v498
  %v500 = vsel %vm497, %v499, %v495
  %v501 = vmul.f32 %v424, %v500
  %v502 = vrcp.pop %v458
  %v503 = vmul.f32 %v458, %v502
  %v504 = vsub.f32 1.0, %v503
  %v505 = vmul.f32 %v502, %v504
  %v506 = vadd.f32 %v502, %v505
  %vm507 = vweird.f32 %v458
  %vm508 = vweird.f32 %v502
  %vm509 = vmor %vm507, %vm508
  %v510 = vsel %vm509, %v502, %v506
  %v511 = vand.u32 2147483647, %v458
  %vm512 = vcmp.eq.f32.partialorder %v511, 8.507059e+37
  %v513 = vand.u32 %v458, 2147483648
  %v514 = vor.u32 1.1754944e-38, %v513
  %v515 = vsel %vm512, %v514, %v510
  %v516 = vmul.f32 %v426, %v515
  %v517 = vrcp.pop %v460
  %v518 = vmul.f32 %v460, %v517
  %v519 = vsub.f32 1.0, %v518
  %v520 = vmul.f32 %v517, %v519
  %v521 = vadd.f32 %v517, %v520
  %vm522 = vweird.f32 %v460
  %vm523 = vweird.f32 %v517
  %vm524 = vmor %vm522, %vm523
  %v525 = vsel %vm524, %v517, %v521
  %v526 = vand.u32 2147483647, %v460
  %vm527 = vcmp.eq.f32.partialorder %v526, 8.507059e+37
  %v528 = vand.u32 %v460, 2147483648
  %v529 = vor.u32 1.1754944e-38, %v528
  %v530 = vsel %vm527, %v529, %v525
  %v531 = vmul.f32 %v428, %v530
  %v532 = vrcp.pop %v462
  %v533 = vmul.f32 %v462, %v532
  %v534 = vsub.f32 1.0, %v533
  %v535 = vmul.f32 %v532, %v534
  %v536 = vadd.f32 %v532, %v535
  %vm537 = vweird.f32 %v462
  %vm538 = vweird.f32 %v532
  %vm539 = vmor %vm537, %vm538
  %v540 = vsel %vm539, %v532, %v536
  %v541 = vand.u32 2147483647, %v462
  %vm542 = vcmp.eq.f32.partialorder %v541, 8.507059e+37
  %v543 = vand.u32 %v462, 2147483648
  %v544 = vor.u32 1.1754944e-38, %v543
  %v545 = vsel %vm542, %v544, %v540
  %v546 = vmul.f32 %v430, %v545
  %v547 = vrcp.pop %v464
  %v548 = vmul.f32 %v464, %v547
  %v549 = vsub.f32 1.0, %v548
  %v550 = vmul.f32 %v547, %v549
  %v551 = vadd.f32 %v547, %v550
  %vm552 = vweird.f32 %v464
  %vm553 = vweird.f32 %v547
  %vm554 = vmor %vm552, %vm553
  %v555 = vsel %vm554, %v547, %v551
  %v556 = vand.u32 2147483647, %v464
  %vm557 = vcmp.eq.f32.partialorder %v556, 8.507059e+37
  %v558 = vand.u32 %v464, 2147483648
  %v559 = vor.u32 1.1754944e-38, %v558
  %v560 = vsel %vm557, %v559, %v555
  %v561 = vmul.f32 %v432, %v560
  %v562 = vrcp.pop %v466
  %v563 = vmul.f32 %v466, %v562
  %v564 = vsub.f32 1.0, %v563
  %v565 = vmul.f32 %v562, %v564
  %v566 = vadd.f32 %v562, %v565
  %vm567 = vweird.f32 %v466
  %vm568 = vweird.f32 %v562
  %vm569 = vmor %vm567, %vm568
  %v570 = vsel %vm569, %v562, %v566
  %v571 = vand.u32 2147483647, %v466
  %vm572 = vcmp.eq.f32.partialorder %v571, 8.507059e+37
  %v573 = vand.u32 %v466, 2147483648
  %v574 = vor.u32 1.1754944e-38, %v573
  %v575 = vsel %vm572, %v574, %v570
  %v576 = vmul.f32 %v434, %v575
  %v577 = vrcp.pop %v468
  %v578 = vmul.f32 %v468, %v577
  %v579 = vsub.f32 1.0, %v578
  %v580 = vmul.f32 %v577, %v579
  %v581 = vadd.f32 %v577, %v580
  %vm582 = vweird.f32 %v468
  %vm583 = vweird.f32 %v577
  %vm584 = vmor %vm582, %vm583
  %v585 = vsel %vm584, %v577, %v581
  %v586 = vand.u32 2147483647, %v468
  %vm587 = vcmp.eq.f32.partialorder %v586, 8.507059e+37
  %v588 = vand.u32 %v468, 2147483648
  %v589 = vor.u32 1.1754944e-38, %v588
  %v590 = vsel %vm587, %v589, %v585
  %v591 = vmul.f32 %v436, %v590
  %v592 = vrcp.pop %v470
  %v593 = vmul.f32 %v470, %v592
  %v594 = vsub.f32 1.0, %v593
  %v595 = vmul.f32 %v592, %v594
  %v596 = vadd.f32 %v592, %v595
  %vm597 = vweird.f32 %v470
  %vm598 = vweird.f32 %v592
  %vm599 = vmor %vm597, %vm598
  %v600 = vsel %vm599, %v592, %v596
  %v601 = vand.u32 2147483647, %v470
  %vm602 = vcmp.eq.f32.partialorder %v601, 8.507059e+37
  %v603 = vand.u32 %v470, 2147483648
  %v604 = vor.u32 1.1754944e-38, %v603
  %v605 = vsel %vm602, %v604, %v600
  %v606 = vmul.f32 %v438, %v605
  %v607 = vrcp.pop %v472
  %v608 = vmul.f32 %v472, %v607
  %v609 = vsub.f32 1.0, %v608
  %v610 = vmul.f32 %v607, %v609
  %v611 = vadd.f32 %v607, %v610
  %vm612 = vweird.f32 %v472
  %vm613 = vweird.f32 %v607
  %vm614 = vmor %vm612, %vm613
  %v615 = vsel %vm614, %v607, %v611
  %v616 = vand.u32 2147483647, %v472
  %vm617 = vcmp.eq.f32.partialorder %v616, 8.507059e+37
  %v618 = vand.u32 %v472, 2147483648
  %v619 = vor.u32 1.1754944e-38, %v618
  %v620 = vsel %vm617, %v619, %v615
  %v621 = vmul.f32 %v440, %v620
  %v622 = vrcp.pop %v474
  %v623 = vmul.f32 %v474, %v622
  %v624 = vsub.f32 1.0, %v623
  %v625 = vmul.f32 %v622, %v624
  %v626 = vadd.f32 %v622, %v625
  %vm627 = vweird.f32 %v474
  %vm628 = vweird.f32 %v622
  %vm629 = vmor %vm627, %vm628
  %v630 = vsel %vm629, %v622, %v626
  %v631 = vand.u32 2147483647, %v474
  %vm632 = vcmp.eq.f32.partialorder %v631, 8.507059e+37
  %v633 = vand.u32 %v474, 2147483648
  %v634 = vor.u32 1.1754944e-38, %v633
  %v635 = vsel %vm632, %v634, %v630
  %v636 = vmul.f32 %v442, %v635
  %v637 = vrcp.pop %v476
  %v638 = vmul.f32 %v476, %v637
  %v639 = vsub.f32 1.0, %v638
  %v640 = vmul.f32 %v637, %v639
  %v641 = vadd.f32 %v637, %v640
  %vm642 = vweird.f32 %v476
  %vm643 = vweird.f32 %v637
  %vm644 = vmor %vm642, %vm643
  %v645 = vsel %vm644, %v637, %v641
  %v646 = vand.u32 2147483647, %v476
  %vm647 = vcmp.eq.f32.partialorder %v646, 8.507059e+37
  %v648 = vand.u32 %v476, 2147483648
  %v649 = vor.u32 1.1754944e-38, %v648
  %v650 = vsel %vm647, %v649, %v645
  %v651 = vmul.f32 %v444, %v650
  %v652 = vrcp.pop %v478
  %v653 = vmul.f32 %v478, %v652
  %v654 = vsub.f32 1.0, %v653
  %v655 = vmul.f32 %v652, %v654
  %v656 = vadd.f32 %v652, %v655
  %vm657 = vweird.f32 %v478
  %vm658 = vweird.f32 %v652
  %vm659 = vmor %vm657, %vm658
  %v660 = vsel %vm659, %v652, %v656
  %v661 = vand.u32 2147483647, %v478
  %vm662 = vcmp.eq.f32.partialorder %v661, 8.507059e+37
  %v663 = vand.u32 %v478, 2147483648
  %v664 = vor.u32 1.1754944e-38, %v663
  %v665 = vsel %vm662, %v664, %v660
  %v666 = vmul.f32 %v446, %v665
  %v667 = vrcp.pop %v480
  %v668 = vmul.f32 %v480, %v667
  %v669 = vsub.f32 1.0, %v668
  %v670 = vmul.f32 %v667, %v669
  %v671 = vadd.f32 %v667, %v670
  %vm672 = vweird.f32 %v480
  %vm673 = vweird.f32 %v667
  %vm674 = vmor %vm672, %vm673
  %v675 = vsel %vm674, %v667, %v671
  %v676 = vand.u32 2147483647, %v480
  %vm677 = vcmp.eq.f32.partialorder %v676, 8.507059e+37
  %v678 = vand.u32 %v480, 2147483648
  %v679 = vor.u32 1.1754944e-38, %v678
  %v680 = vsel %vm677, %v679, %v675
  %v681 = vmul.f32 %v448, %v680
  %v682 = vrcp.pop %v482
  %v683 = vmul.f32 %v482, %v682
  %v684 = vsub.f32 1.0, %v683
  %v685 = vmul.f32 %v682, %v684
  %v686 = vadd.f32 %v682, %v685
  %vm687 = vweird.f32 %v482
  %vm688 = vweird.f32 %v682
  %vm689 = vmor %vm687, %vm688
  %v690 = vsel %vm689, %v682, %v686
  %v691 = vand.u32 2147483647, %v482
  %vm692 = vcmp.eq.f32.partialorder %v691, 8.507059e+37
  %v693 = vand.u32 %v482, 2147483648
  %v694 = vor.u32 1.1754944e-38, %v693
  %v695 = vsel %vm692, %v694, %v690
  %v696 = vmul.f32 %v450, %v695
  %v697 = vrcp.pop %v484
  %v698 = vmul.f32 %v484, %v697
  %v699 = vsub.f32 1.0, %v698
  %v700 = vmul.f32 %v697, %v699
  %v701 = vadd.f32 %v697, %v700
  %vm702 = vweird.f32 %v484
  %vm703 = vweird.f32 %v697
  %vm704 = vmor %vm702, %vm703
  %v705 = vsel %vm704, %v697, %v701
  %v706 = vand.u32 2147483647, %v484
  %vm707 = vcmp.eq.f32.partialorder %v706, 8.507059e+37
  %v708 = vand.u32 %v484, 2147483648
  %v709 = vor.u32 1.1754944e-38, %v708
  %v710 = vsel %vm707, %v709, %v705
  %v711 = vmul.f32 %v452, %v710
  %v712 = vrcp.pop %v486
  %v713 = vmul.f32 %v486, %v712
  %v714 = vsub.f32 1.0, %v713
  %v715 = vmul.f32 %v712, %v714
  %v716 = vadd.f32 %v712, %v715
  %vm717 = vweird.f32 %v486
  %vm718 = vweird.f32 %v712
  %vm719 = vmor %vm717, %vm718
  %v720 = vsel %vm719, %v712, %v716
  %v721 = vand.u32 2147483647, %v486
  %vm722 = vcmp.eq.f32.partialorder %v721, 8.507059e+37
  %v723 = vand.u32 %v486, 2147483648
  %v724 = vor.u32 1.1754944e-38, %v723
  %v725 = vsel %vm722, %v724, %v720
  %v726 = vmul.f32 %v454, %v725
  %727 = vmatpush.msra.mxu0 %v38
  %728 = vmatpush.msra.mxu0 %v37
  %729 = vmatpush.msra.mxu0 %v36
  %730 = vmatpush.msra.mxu0 %v35
  %731 = vmatpush.msra.mxu0 %v34
  %732 = vmatpush.msra.mxu0 %v33
  %733 = vmatpush.msra.mxu0 %v32
  %734 = vmatpush.msra.mxu0 %v31
  %735 = vmatpush.msra.mxu0 %v30
  %736 = vmatpush.msra.mxu0 %v29
  %737 = vmatpush.msra.mxu0 %v28
  %738 = vmatpush.msra.mxu0 %v27
  %739 = vmatpush.msra.mxu0 %v26
  %740 = vmatpush.msra.mxu0 %v25
  %741 = vmatpush.msra.mxu0 %v24
  %742 = vmatpush.msra.mxu0 %v23
  %743 = vmatmul.f32.gmra.mxu0 %v501
  %v744 = vpop.f32.mrf.mxu0
  %v745 = vadd.f32 0.0, %v744
  %746 = vmatmul.f32.gmra.mxu0 %v516
  %v747 = vpop.f32.mrf.mxu0
  %v748 = vadd.f32 0.0, %v747
  %749 = vmatmul.f32.gmra.mxu0 %v531
  %v750 = vpop.f32.mrf.mxu0
  %v751 = vadd.f32 0.0, %v750
  %752 = vmatmul.f32.gmra.mxu0 %v546
  %v753 = vpop.f32.mrf.mxu0
  %v754 = vadd.f32 0.0, %v753
  %755 = vmatmul.f32.gmra.mxu0 %v561
  %v756 = vpop.f32.mrf.mxu0
  %v757 = vadd.f32 0.0, %v756
  %758 = vmatmul.f32.gmra.mxu0 %v576
  %v759 = vpop.f32.mrf.mxu0
  %v760 = vadd.f32 0.0, %v759
  %761 = vmatmul.f32.gmra.mxu0 %v591
  %v762 = vpop.f32.mrf.mxu0
  %v763 = vadd.f32 0.0, %v762
  %764 = vmatmul.f32.gmra.mxu0 %v606
  %v765 = vpop.f32.mrf.mxu0
  %v766 = vadd.f32 0.0, %v765
  %767 = vmatmul.f32.gmra.mxu0 %v621
  %v768 = vpop.f32.mrf.mxu0
  %v769 = vadd.f32 0.0, %v768
  %770 = vmatmul.f32.gmra.mxu0 %v636
  %v771 = vpop.f32.mrf.mxu0
  %v772 = vadd.f32 0.0, %v771
  %773 = vmatmul.f32.gmra.mxu0 %v651
  %v774 = vpop.f32.mrf.mxu0
  %v775 = vadd.f32 0.0, %v774
  %776 = vmatmul.f32.gmra.mxu0 %v666
  %v777 = vpop.f32.mrf.mxu0
  %v778 = vadd.f32 0.0, %v777
  %779 = vmatmul.f32.gmra.mxu0 %v681
  %v780 = vpop.f32.mrf.mxu0
  %v781 = vadd.f32 0.0, %v780
  %782 = vmatmul.f32.gmra.mxu0 %v696
  %v783 = vpop.f32.mrf.mxu0
  %v784 = vadd.f32 0.0, %v783
  %785 = vmatmul.f32.gmra.mxu0 %v711
  %v786 = vpop.f32.mrf.mxu0
  %v787 = vadd.f32 0.0, %v786
  %788 = vmatmul.f32.gmra.mxu0 %v726
  %v789 = vpop.f32.mrf.mxu0
  %v790 = vadd.f32 0.0, %v789
  %791 = vdwg.mxu0
  %v793 = vsel %vm68, %v745, 0
  %v796 = vsel %vm68, %v748, 0
  %v799 = vsel %vm68, %v751, 0
  %v802 = vsel %vm68, %v754, 0
  %v805 = vsel %vm68, %v757, 0
  %v808 = vsel %vm68, %v760, 0
  %v811 = vsel %vm68, %v763, 0
  %v814 = vsel %vm68, %v766, 0
  %v817 = vsel %vm68, %v769, 0
  %v820 = vsel %vm68, %v772, 0
  %v823 = vsel %vm68, %v775, 0
  %v826 = vsel %vm68, %v778, 0
  %v829 = vsel %vm68, %v781, 0
  %v832 = vsel %vm68, %v784, 0
  %v835 = vsel %vm68, %v787, 0
  %v838 = vsel %vm68, %v790, 0
  %840 = vmatpush.msra.mxu0 0.0
  %841 = vmatpush.msra.mxu0 0.0
  %842 = vmatpush.msra.mxu0 0.0
  %843 = vmatpush.msra.mxu0 0.0
  %844 = vmatpush.msra.mxu0 0.0
  %845 = vmatpush.msra.mxu0 0.0
  %846 = vmatpush.msra.mxu0 0.0
  %847 = vmatpush.msra.mxu0 0.0
  %848 = vmatpush.msra.mxu0 0.0
  %849 = vmatpush.msra.mxu0 0.0
  %850 = vmatpush.msra.mxu0 0.0
  %851 = vmatpush.msra.mxu0 0.0
  %852 = vmatpush.msra.mxu0 %v66
  %853 = vmatpush.msra.mxu0 %v65
  %854 = vmatpush.msra.mxu0 %v64
  %855 = vmatpush.msra.mxu0 %v63
  %856 = vmatmul.f32.gmra.mxu0 %v793
  %v857 = vpop.f32.mrf.mxu0
  %v858 = vadd.f32 0.0, %v857
  %859 = vmatmul.f32.gmra.mxu0 %v796
  %v860 = vpop.f32.mrf.mxu0
  %v861 = vadd.f32 0.0, %v860
  %862 = vmatmul.f32.gmra.mxu0 %v799
  %v863 = vpop.f32.mrf.mxu0
  %v864 = vadd.f32 0.0, %v863
  %865 = vmatmul.f32.gmra.mxu0 %v802
  %v866 = vpop.f32.mrf.mxu0
  %v867 = vadd.f32 0.0, %v866
  %868 = vmatmul.f32.gmra.mxu0 %v805
  %v869 = vpop.f32.mrf.mxu0
  %v870 = vadd.f32 0.0, %v869
  %871 = vmatmul.f32.gmra.mxu0 %v808
  %v872 = vpop.f32.mrf.mxu0
  %v873 = vadd.f32 0.0, %v872
  %874 = vmatmul.f32.gmra.mxu0 %v811
  %v875 = vpop.f32.mrf.mxu0
  %v876 = vadd.f32 0.0, %v875
  %877 = vmatmul.f32.gmra.mxu0 %v814
  %v878 = vpop.f32.mrf.mxu0
  %v879 = vadd.f32 0.0, %v878
  %880 = vmatmul.f32.gmra.mxu0 %v817
  %v881 = vpop.f32.mrf.mxu0
  %v882 = vadd.f32 0.0, %v881
  %883 = vmatmul.f32.gmra.mxu0 %v820
  %v884 = vpop.f32.mrf.mxu0
  %v885 = vadd.f32 0.0, %v884
  %886 = vmatmul.f32.gmra.mxu0 %v823
  %v887 = vpop.f32.mrf.mxu0
  %v888 = vadd.f32 0.0, %v887
  %889 = vmatmul.f32.gmra.mxu0 %v826
  %v890 = vpop.f32.mrf.mxu0
  %v891 = vadd.f32 0.0, %v890
  %892 = vmatmul.f32.gmra.mxu0 %v829
  %v893 = vpop.f32.mrf.mxu0
  %v894 = vadd.f32 0.0, %v893
  %895 = vmatmul.f32.gmra.mxu0 %v832
  %v896 = vpop.f32.mrf.mxu0
  %v897 = vadd.f32 0.0, %v896
  %898 = vmatmul.f32.gmra.mxu0 %v835
  %v899 = vpop.f32.mrf.mxu0
  %v900 = vadd.f32 0.0, %v899
  %901 = vmatmul.f32.gmra.mxu0 %v838
  %v902 = vpop.f32.mrf.mxu0
  %v903 = vadd.f32 0.0, %v902
  %904 = vdwg.mxu0
  %905 = vmatpush.msra.mxu0 0.0
  %906 = vmatpush.msra.mxu0 0.0
  %907 = vmatpush.msra.mxu0 0.0
  %908 = vmatpush.msra.mxu0 0.0
  %909 = vmatpush.msra.mxu0 0.0
  %910 = vmatpush.msra.mxu0 0.0
  %911 = vmatpush.msra.mxu0 0.0
  %912 = vmatpush.msra.mxu0 0.0
  %913 = vmatpush.msra.mxu0 0.0
  %914 = vmatpush.msra.mxu0 0.0
  %915 = vmatpush.msra.mxu0 0.0
  %916 = vmatpush.msra.mxu0 0.0
  %917 = vmatpush.msra.mxu0 %v62
  %918 = vmatpush.msra.mxu0 %v61
  %919 = vmatpush.msra.mxu0 %v60
  %920 = vmatpush.msra.mxu0 %v59
  %921 = vmatmul.f32.gmra.mxu0 %v70
  %v922 = vpop.f32.mrf.mxu0
  %v923 = vadd.f32 %v858, %v922
  %924 = vmatmul.f32.gmra.mxu0 %v73
  %v925 = vpop.f32.mrf.mxu0
  %v926 = vadd.f32 %v861, %v925
  %927 = vmatmul.f32.gmra.mxu0 %v76
  %v928 = vpop.f32.mrf.mxu0
  %v929 = vadd.f32 %v864, %v928
  %930 = vmatmul.f32.gmra.mxu0 %v79
  %v931 = vpop.f32.mrf.mxu0
  %v932 = vadd.f32 %v867, %v931
  %933 = vmatmul.f32.gmra.mxu0 %v82
  %v934 = vpop.f32.mrf.mxu0
  %v935 = vadd.f32 %v870, %v934
  %936 = vmatmul.f32.gmra.mxu0 %v85
  %v937 = vpop.f32.mrf.mxu0
  %v938 = vadd.f32 %v873, %v937
  %939 = vmatmul.f32.gmra.mxu0 %v88
  %v940 = vpop.f32.mrf.mxu0
  %v941 = vadd.f32 %v876, %v940
  %942 = vmatmul.f32.gmra.mxu0 %v91
  %v943 = vpop.f32.mrf.mxu0
  %v944 = vadd.f32 %v879, %v943
  %945 = vmatmul.f32.gmra.mxu0 %v94
  %v946 = vpop.f32.mrf.mxu0
  %v947 = vadd.f32 %v882, %v946
  %948 = vmatmul.f32.gmra.mxu0 %v97
  %v949 = vpop.f32.mrf.mxu0
  %v950 = vadd.f32 %v885, %v949
  %951 = vmatmul.f32.gmra.mxu0 %v100
  %v952 = vpop.f32.mrf.mxu0
  %v953 = vadd.f32 %v888, %v952
  %954 = vmatmul.f32.gmra.mxu0 %v103
  %v955 = vpop.f32.mrf.mxu0
  %v956 = vadd.f32 %v891, %v955
  %957 = vmatmul.f32.gmra.mxu0 %v106
  %v958 = vpop.f32.mrf.mxu0
  %v959 = vadd.f32 %v894, %v958
  %960 = vmatmul.f32.gmra.mxu0 %v109
  %v961 = vpop.f32.mrf.mxu0
  %v962 = vadd.f32 %v897, %v961
  %963 = vmatmul.f32.gmra.mxu0 %v112
  %v964 = vpop.f32.mrf.mxu0
  %v965 = vadd.f32 %v900, %v964
  %966 = vmatmul.f32.gmra.mxu0 %v115
  %v967 = vpop.f32.mrf.mxu0
  %v968 = vadd.f32 %v903, %v967
  %969 = vdwg.mxu0
  %v971 = vperm.slane %v67, 0
  %v973 = vadd.f32 %v923, %v971
  %v974 = vadd.f32 %v926, %v971
  %v975 = vadd.f32 %v929, %v971
  %v976 = vadd.f32 %v932, %v971
  %v977 = vadd.f32 %v935, %v971
  %v978 = vadd.f32 %v938, %v971
  %v979 = vadd.f32 %v941, %v971
  %v980 = vadd.f32 %v944, %v971
  %v981 = vadd.f32 %v947, %v971
  %v982 = vadd.f32 %v950, %v971
  %v983 = vadd.f32 %v953, %v971
  %v984 = vadd.f32 %v956, %v971
  %v985 = vadd.f32 %v959, %v971
  %v986 = vadd.f32 %v962, %v971
  %v987 = vadd.f32 %v965, %v971
  %v988 = vadd.f32 %v968, %v971
  %v989 = vmax.f32 %v973, 0.0
  %v990 = vmax.f32 %v974, 0.0
  %v991 = vmax.f32 %v975, 0.0
  %v992 = vmax.f32 %v976, 0.0
  %v993 = vmax.f32 %v977, 0.0
  %v994 = vmax.f32 %v978, 0.0
  %v995 = vmax.f32 %v979, 0.0
  %v996 = vmax.f32 %v980, 0.0
  %v997 = vmax.f32 %v981, 0.0
  %v998 = vmax.f32 %v982, 0.0
  %v999 = vmax.f32 %v983, 0.0
  %v1000 = vmax.f32 %v984, 0.0
  %v1001 = vmax.f32 %v985, 0.0
  %v1002 = vmax.f32 %v986, 0.0
  %v1003 = vmax.f32 %v987, 0.0
  %v1004 = vmax.f32 %v988, 0.0
  %1005 = vst.msk [vmem:[%s6] sm:$0xff] %vm68, %v989
  %1006 = vst.msk [vmem:[%s6 + $0x8] sm:$0xff] %vm68, %v990
  %1007 = vst.msk [vmem:[%s6 + $0x10] sm:$0xff] %vm68, %v991
  %1008 = vst.msk [vmem:[%s6 + $0x18] sm:$0xff] %vm68, %v992
  %1009 = vst.msk [vmem:[%s6 + $0x20] sm:$0xff] %vm68, %v993
  %1010 = vst.msk [vmem:[%s6 + $0x28] sm:$0xff] %vm68, %v994
  %1011 = vst.msk [vmem:[%s6 + $0x30] sm:$0xff] %vm68, %v995
  %1012 = vst.msk [vmem:[%s6 + $0x38] sm:$0xff] %vm68, %v996
  %1013 = vst.msk [vmem:[%s6 + $0x40] sm:$0xff] %vm68, %v997
  %1014 = vst.msk [vmem:[%s6 + $0x48] sm:$0xff] %vm68, %v998
  %1015 = vst.msk [vmem:[%s6 + $0x50] sm:$0xff] %vm68, %v999
  %1016 = vst.msk [vmem:[%s6 + $0x58] sm:$0xff] %vm68, %v1000
  %1017 = vst.msk [vmem:[%s6 + $0x60] sm:$0xff] %vm68, %v1001
  %1018 = vst.msk [vmem:[%s6 + $0x68] sm:$0xff] %vm68, %v1002
  %1019 = vst.msk [vmem:[%s6 + $0x70] sm:$0xff] %vm68, %v1003
  %1020 = vst.msk [vmem:[%s6 + $0x78] sm:$0xff] %vm68, %v1004
  // Predicated region
  $region26: #{tpu_custom_call.1} parent=0 // pred_check
    _
  $region27: #{tpu_custom_call.1} parent=0 // pred_check_branch
    %1022 = sbr.rel (0) target = $region29
  $region28: #{tpu_custom_call.1} parent=0 // pred_region
    _
  $region29: #{tpu_custom_call.1} parent=0 // pred_fallthru
    _
  // Predicated region
  $region30: #{tpu_custom_call.1} parent=0 // pred_check
    _
  $region31: #{tpu_custom_call.1} parent=0 // pred_check_branch
    %1024 = sbr.rel (0) target = $region33
  $region32: #{tpu_custom_call.1} parent=0 // pred_region
    _
  $region33: #{tpu_custom_call.1} parent=0 // pred_fallthru
    _

</llo_original>
